<compile_context>
chip_gen: v5e
topology: v5e:2x2
jax: 0.10.0
libtpu: 0.0.40
codegen_flags: <defaults>
</compile_context>

<pallas_src>
import math

import jax
import jax.numpy as jnp
from jax.experimental import pallas as pl
from jax.experimental.pallas import tpu as pltpu


def _add_pe_kernel(x_ref, pe_ref, o_ref):
    # x_ref / o_ref: (TB, TR, 128) block; pe_ref: (1, TR, 128) block
    # (batch-invariant; the VPU add broadcasts it over the block's batch dim).
    o_ref[...] = x_ref[...] + pe_ref[...]


def _build_pe(S, D, dtype):
    """Positional-encoding table (S, D), matching the PyTorch buffer construction."""
    position = jnp.arange(S, dtype=jnp.float32)[:, None]                    # (S, 1)
    div_term = jnp.exp(jnp.arange(0, D, 2, dtype=jnp.float32)
                       * (-math.log(10000.0) / D))                          # (D//2,)
    angles = position * div_term                                            # (S, D//2)
    # interleave: even cols = sin, odd cols = cos
    pe = jnp.stack([jnp.sin(angles), jnp.cos(angles)], axis=-1).reshape(S, D)
    # Cast to x's dtype; for bf16 this differs from torch (f32 buffer added then
    # downcast later) only within bf16 rounding.
    return pe.astype(dtype)


def positional_encoding(x, max_len=5000):
    """x: (B, S, D) array. Returns x + pe[None, :S, :] via a Pallas TPU kernel."""
    B, S, D = x.shape
    assert S <= max_len, "sequence length exceeds max_len"
    assert D % 2 == 0, "d_model must be even (matches the torch module)"

    itemsize = jnp.dtype(x.dtype).itemsize

    # PE computed once (in x's dtype) — the kernel only does the broadcast add.
    pe = _build_pe(S, D, x.dtype)                                           # (S, D)

    # Lane-dense layout: flatten (S, D) and pad to a multiple of 128 lanes so
    # every store is a full-width vst (no masked partial stores).
    LANES = 128
    N = S * D
    R = pl.cdiv(N, LANES)
    Npad = R * LANES

    x_flat = x.reshape(B, N)
    pe_flat = pe.reshape(N)
    if Npad != N:
        x_flat = jnp.pad(x_flat, ((0, 0), (0, Npad - N)))
        pe_flat = jnp.pad(pe_flat, (0, Npad - N))
    x3 = x_flat.reshape(B, R, LANES)
    pe3 = pe_flat.reshape(1, R, LANES)

    total_bytes = B * R * LANES * itemsize
    if total_bytes <= (1 << 20):
        # Small-problem fast path: single block, one DMA-in / add / DMA-out.
        TB, TR = B, R
    else:
        TB = 1
        # Largest row tile that keeps the 6 double-buffered blocks (x, pe, out)
        # inside the 32 MiB scoped-VMEM budget on all generations (v7x: 64 MiB
        # VMEM/TC).  TR=4096 f32 -> ~12.6 MiB.  4096 is a multiple of 8 (f32)
        # and 16 (bf16) sublanes; R itself (full extent) is always legal.
        TR = R if R <= 4096 else 4096

    num_r = pl.cdiv(R, TR)
    num_b = pl.cdiv(B, TB)

    out = pl.pallas_call(
        _add_pe_kernel,
        out_shape=jax.ShapeDtypeStruct((B, R, LANES), x.dtype),
        grid_spec=pl.GridSpec(
            # batch is the innermost grid axis so the pe block index is unchanged
            # across consecutive iterations -> stays VMEM-resident (no re-DMA).
            grid=(num_r, num_b),
            in_specs=[
                pl.BlockSpec((TB, TR, LANES), lambda r, b: (b, r, 0)),  # x
                pl.BlockSpec((1, TR, LANES), lambda r, b: (0, r, 0)),   # pe (batch-inv.)
            ],
            out_specs=pl.BlockSpec((TB, TR, LANES), lambda r, b: (b, r, 0)),
        ),
        # Rows "parallel" (megacore split along rows on v7x preserves the pe
        # revisit), batch "arbitrary" (sequential, batch-innermost).
        compiler_params=pltpu.CompilerParams(
            dimension_semantics=("parallel", "arbitrary"),
            vmem_limit_bytes=32 * 1024 * 1024,
        ),
        # x is dead after the add -> write the result in place over the x slab.
        input_output_aliases={0: 0},
    )(x3, pe3)

    out = out.reshape(B, Npad)
    if Npad != N:
        out = out[:, :N]
    return out.reshape(B, S, D)


def _reference(x):
    """Pure-JAX reference mirroring the PyTorch buffer construction."""
    B, S, D = x.shape
    position = jnp.arange(S, dtype=jnp.float32)[:, None]
    div_term = jnp.exp(jnp.arange(0, D, 2, dtype=jnp.float32)
                       * (-math.log(10000.0) / D))
    pe = jnp.zeros((S, D), jnp.float32)
    pe = pe.at[:, 0::2].set(jnp.sin(position * div_term))
    pe = pe.at[:, 1::2].set(jnp.cos(position * div_term))
    return x + pe[None, :, :]


if __name__ == "__main__":
    # Small demo shape (batch=2, seq=8, d_model=32) -> single-block fast path.
    x = jax.random.normal(jax.random.PRNGKey(0), (2, 8, 32), dtype=jnp.float32)
    out = jax.block_until_ready(positional_encoding(x))
    assert out.shape == x.shape
    assert jnp.allclose(out, _reference(x), atol=1e-5, rtol=1e-5), "mismatch (small)"

    # Padded lane-dense fallback path (S*D not a multiple of 128).
    x2 = jax.random.normal(jax.random.PRNGKey(1), (2, 9, 24), dtype=jnp.float32)
    out2 = jax.block_until_ready(positional_encoding(x2))
    assert out2.shape == x2.shape
    assert jnp.allclose(out2, _reference(x2), atol=1e-5, rtol=1e-5), "mismatch (padded)"

    # Tiled path (grid > 1 along batch, lane-dense 128-wide blocks).
    x3 = jax.random.normal(jax.random.PRNGKey(2), (4, 512, 256), dtype=jnp.float32)
    out3 = jax.block_until_ready(positional_encoding(x3))
    assert out3.shape == x3.shape
    assert jnp.allclose(out3, _reference(x3), atol=1e-5, rtol=1e-5), "mismatch (tiled)"

    print("KERNEL_OK")
</pallas_src>

<mosaic_0001>
module attributes {stable_mosaic.version = 11 : i64} {
  func.func @_add_pe_kernel(%arg0: i32, %arg1: i32, %arg2: memref<2x2x128xf32, #tpu.memory_space<vmem>>, %arg3: memref<1x2x128xf32, #tpu.memory_space<vmem>>, %arg4: memref<2x2x128xf32, #tpu.memory_space<vmem>>) attributes {dimension_semantics = [#tpu.dimension_semantics<parallel>, #tpu.dimension_semantics<arbitrary>], iteration_bounds = array<i64: 1, 1>, scalar_prefetch = 0 : i64, scratch_operands = 0 : i64, tpu.core_type = #tpu.core_type<tc>, window_params = [{transform_indices = @transform_0, window_bounds = array<i64: 2, 2, 128>}, {transform_indices = @transform_1, window_bounds = array<i64: 1, 2, 128>}, {transform_indices = @transform_2, window_bounds = array<i64: 2, 2, 128>}]} {
    %c0 = arith.constant 0 : index
    %c0_0 = arith.constant 0 : index
    %c0_1 = arith.constant 0 : index
    %0 = vector.load %arg2[%c0, %c0_0, %c0_1] : memref<2x2x128xf32, #tpu.memory_space<vmem>>, vector<2x2x128xf32>
    %c0_2 = arith.constant 0 : index
    %c0_3 = arith.constant 0 : index
    %c0_4 = arith.constant 0 : index
    %1 = vector.load %arg3[%c0_2, %c0_3, %c0_4] : memref<1x2x128xf32, #tpu.memory_space<vmem>>, vector<1x2x128xf32>
    %2 = vector.broadcast %1 : vector<1x2x128xf32> to vector<2x2x128xf32>
    %3 = arith.addf %0, %2 : vector<2x2x128xf32>
    %c0_5 = arith.constant 0 : index
    %c0_6 = arith.constant 0 : index
    %c0_7 = arith.constant 0 : index
    %4 = vector.load %arg4[%c0_5, %c0_6, %c0_7] : memref<2x2x128xf32, #tpu.memory_space<vmem>>, vector<2x2x128xf32>
    tpu.vector_store %arg4[%c0_5, %c0_6, %c0_7], %3 {strides = array<i32>} : memref<2x2x128xf32, #tpu.memory_space<vmem>>, vector<2x2x128xf32>,
    return
  }
  func.func @transform_0(%arg0: i32, %arg1: i32) -> (i32, i32, i32) {
    %c0_i32 = arith.constant 0 : i32
    %c0_i32_0 = arith.constant 0 : i32
    return %arg1, %arg0, %c0_i32 : i32, i32, i32
  }
  func.func @transform_1(%arg0: i32, %arg1: i32) -> (i32, i32, i32) {
    %c0_i32 = arith.constant 0 : i32
    %c0_i32_0 = arith.constant 0 : i32
    %c0_i32_1 = arith.constant 0 : i32
    return %c0_i32, %arg0, %c0_i32_0 : i32, i32, i32
  }
  func.func @transform_2(%arg0: i32, %arg1: i32) -> (i32, i32, i32) {
    %c0_i32 = arith.constant 0 : i32
    %c0_i32_0 = arith.constant 0 : i32
    return %arg1, %arg0, %c0_i32 : i32, i32, i32
  }
}

</mosaic_0001>

<llo_original>
// kernel: tpu_custom_call.1
$region0: #{tpu_custom_call.1}
  #allocation0 [shape = 'u32[]', space=smem, size = 0x4, offset = 0x4, fixed_abs, tag = 'smem constant byte address 0x4 - core index']
  #allocation1 [shape = 'u32[72,128]{1,0:T(1,128)}', space=vmem, size = 0x9000, scoped, tag = 'internal scratch']
  %s0 = inlined_call_operand.hbm [shape: f32[2,2,128], index: 0, kind: input, shape index: {}, may-alias: {0,2}]
  %s1 = inlined_call_operand.vmem [shape: f32[1,2,128], index: 1, kind: input, shape index: {}]
  %s2 = inlined_call_operand.hbm [shape: f32[2,2,128], index: 2, kind: output, shape index: {}, may-alias: {0,2}]
  %s3 = sld [smem:[#allocation0]]
  $region22: #{tpu_custom_call.1} parent=0
    _
  %s5 = ssub.s32 1, %s3
  %s6 = scalar_select 0, %s5, %s3
  $region1: #{tpu_custom_call.1} parent=0
    #allocation2 [shape = 'u8[2048]{0}', space=vmem, size = 0x800, scoped, tag = 'input window, operand 0, single buffered']
    #allocation3 [shape = 's32[1]{0}', space=sflag, size = 0x4, scoped, tag = 'scoped memory for tpu_custom_call.1']
    #allocation4 [shape = 's32[1]{0}', space=sflag, size = 0x4, scoped, tag = 'scoped memory for tpu_custom_call.1']
    #allocation5 [shape = 'u8[2048]{0}', space=vmem, size = 0x800, scoped, tag = 'output window, operand 0, single buffered']
    %7 = vsyncpa [#allocation3], 0
    %8 = vsyncpa [#allocation4], 0
    // Predicated region
    $region2: #{tpu_custom_call.1} parent=1 // pred_check
      _
    $region3: #{tpu_custom_call.1} parent=1 // pred_check_branch
      %10 = sbr.rel (0) target = $region5
    $region4: #{tpu_custom_call.1} parent=1 // pred_region
      %12 = vsyncadd [#allocation3], 0
      %s13 = sshll.u32 %s0, 4
      %s14 = int_to_ptr.hbm [resolvable:$true] %s13
      %s15 = sshll.u32 [#allocation2], 4
      %s16 = int_to_ptr.vmem [resolvable:$true] %s15
      %21 = dma.hbm_to_vmem [thread:$0]  %s14, 64, %s16, [#allocation3], 32, 32, 2
    $region5: #{tpu_custom_call.1} parent=1 // pred_fallthru
      _
    // Predicated region
    $region6: #{tpu_custom_call.1} parent=1 // pred_check
      _
    $region7: #{tpu_custom_call.1} parent=1 // pred_check_branch
      %23 = sbr.rel (0) target = $region9
    $region8: #{tpu_custom_call.1} parent=1 // pred_region
      _
    $region9: #{tpu_custom_call.1} parent=1 // pred_fallthru
      _
    // Predicated region
    $region10: #{tpu_custom_call.1} parent=1 // pred_check
      _
    $region11: #{tpu_custom_call.1} parent=1 // pred_check_branch
      %25 = sbr.rel (0) target = $region13
    $region12: #{tpu_custom_call.1} parent=1 // pred_region
      %27 = dma.done [#allocation3], 64
    $region13: #{tpu_custom_call.1} parent=1 // pred_fallthru
      _
    %v28 = vld [vmem:[#allocation2] sm:$0x3]
    %v29 = vld [vmem:[#allocation2 + $0x2] sm:$0x3]
    %v30 = vld [vmem:[%s1] sm:$0x3]
    %v31 = vadd.f32 %v28, %v30
    %v32 = vadd.f32 %v29, %v30
    %33 = vst [vmem:[#allocation5] sm:$0x3] %v31
    %34 = vst [vmem:[#allocation5 + $0x2] sm:$0x3] %v32
    // Predicated region
    $region14: #{tpu_custom_call.1} parent=1 // pred_check
      _
    $region15: #{tpu_custom_call.1} parent=1 // pred_check_branch
      %36 = sbr.rel (0) target = $region17
    $region16: #{tpu_custom_call.1} parent=1 // pred_region
      %38 = vsyncadd [#allocation4], 0
      %s39 = sshll.u32 [#allocation5], 4
      %s40 = int_to_ptr.vmem [resolvable:$true] %s39
      %s41 = sshll.u32 %s2, 4
      %s42 = int_to_ptr.hbm [resolvable:$true] %s41
      %47 = dma.vmem_to_hbm [thread:$0]  %s40, 64, %s42, [#allocation4], 32, 32, 2
    $region17: #{tpu_custom_call.1} parent=1 // pred_fallthru
      _
    // Predicated region
    $region18: #{tpu_custom_call.1} parent=1 // pred_check
      _
    $region19: #{tpu_custom_call.1} parent=1 // pred_check_branch
      %49 = sbr.rel (0) target = $region21
    $region20: #{tpu_custom_call.1} parent=1 // pred_region
      %51 = dma.done [#allocation4], 64
    $region21: #{tpu_custom_call.1} parent=1 // pred_fallthru
      _
    %52 = vsyncpa [#allocation3], 1
    %53 = vsyncpa [#allocation4], 1

</llo_original>
